<compile_context>
chip_gen: v5e
topology: v5e:2x2
jax: 0.10.0
libtpu: 0.0.40
codegen_flags: <defaults>
</compile_context>

<pallas_src>
import jax
import jax.numpy as jnp
from jax.experimental import pallas as pl
from jax.experimental.pallas import tpu as pltpu

_LANES = 128                      # vreg lane width -> lane-dense stores
_TARGET_BLOCK_BYTES = 8 << 20     # ~8 MiB/tile; x4 (in+out, double-buffered)
                                  # ~= 32 MiB VMEM footprint
_VMEM_LIMIT_BYTES = 48 << 20      # headroom over the 32 MiB footprint; below
                                  # v7x's 64 MiB physical VMEM, well below
                                  # v5e/v6e's 128 MiB.


def _copy_kernel(x_ref, o_ref):
    # Hot path: full-tile VMEM copy (unmasked, lane-dense stores).
    o_ref[...] = x_ref[...]


def _sublane_multiple(dtype):
    """Native sublane packing: 8 rows (32-bit), 16 (16-bit), 32 (8-bit)."""
    return max(8, 32 // jnp.dtype(dtype).itemsize)


def _pick_row_block(rows, row_bytes, sub):
    """Row-block size: <= ~8 MiB per tile, a multiple of the dtype's native
    sublane count, preferring a block that divides `rows` evenly (no partial
    edge tile), and giving >= 2 grid steps when possible (v7x dual-TC)."""
    if rows <= sub:
        return rows                          # single block == full array (legal)
    rb = max(sub, (_TARGET_BLOCK_BYTES // row_bytes) // sub * sub)
    rb = min(rb, rows)
    if rb >= rows and rows >= 2 * sub:
        # Ensure >= 2 grid steps so both v7x TensorCores get work.
        rb = max(sub, (rows // 2) // sub * sub)
    # Prefer the largest block <= rb (but >= rb/2) that divides rows evenly,
    # so there is no trailing partial tile; otherwise keep rb (Pallas masks
    # the single edge tile, which is cheap).
    r = (rb // sub) * sub
    floor = max(sub, rb // 2)
    while r >= floor:
        if rows % r == 0:
            return r
        r -= sub
    return rb


def _lane_dense_copy(x2):
    """Tiled (rows, 128) HBM->VMEM->HBM copy, auto-pipelined by BlockSpec."""
    rows, lanes = x2.shape
    itemsize = x2.dtype.itemsize
    sub = _sublane_multiple(x2.dtype)
    rb = _pick_row_block(rows, lanes * itemsize, sub)
    cost = pl.CostEstimate(
        flops=0, transcendentals=0, bytes_accessed=2 * rows * lanes * itemsize
    )
    return pl.pallas_call(
        _copy_kernel,
        out_shape=jax.ShapeDtypeStruct((rows, lanes), x2.dtype),
        grid=(pl.cdiv(rows, rb),),
        in_specs=[pl.BlockSpec((rb, lanes), lambda i: (i, 0))],
        out_specs=pl.BlockSpec((rb, lanes), lambda i: (i, 0)),
        compiler_params=pltpu.CompilerParams(
            dimension_semantics=("parallel",),
            vmem_limit_bytes=_VMEM_LIMIT_BYTES,
        ),
        cost_estimate=cost,
    )(x2)


def identity_embedding(x):
    """Pallas equivalent of IdentityEmbeddingModule.forward(x) -> x.

    NOTE(perf): a true identity is optimally just `return x` (zero HBM
    traffic); this kernel exists to demonstrate a roofline-tuned copy.
    """
    orig_shape = x.shape
    n = x.size
    if n == 0:
        return x

    if n % _LANES == 0:
        rows = n // _LANES
        y2 = _lane_dense_copy(x.reshape(rows, _LANES))
        return y2.reshape(orig_shape)

    # Fallback (size not a multiple of 128): pad the flattened array to a
    # lane multiple, reuse the tiled lane-dense path, slice the padding off.
    pad = (-n) % _LANES
    flat = jnp.pad(x.reshape(-1), (0, pad))
    y2 = _lane_dense_copy(flat.reshape((n + pad) // _LANES, _LANES))
    return y2.reshape(-1)[:n].reshape(orig_shape)


if __name__ == "__main__":
    # IdentityEmbeddingModule(embed_dim) has no parameters; embed_dim only
    # records output_dim.  Construct deterministic (B, T, embed_dim) inputs.
    key = jax.random.PRNGKey(0)
    k0, k1, k2 = jax.random.split(key, 3)

    # Main case: lane-aligned f32.
    B, T, embed_dim = 2, 8, 32
    x = jax.random.normal(k0, (B, T, embed_dim), dtype=jnp.float32)
    y = identity_embedding(x)
    jax.block_until_ready(y)
    assert y.shape == x.shape and y.dtype == x.dtype
    assert bool(jnp.array_equal(y, x))

    # bf16 case: exercises dtype-aware sublane rounding and the >=2-step grid.
    xb = jax.random.normal(k1, (4, 16, 64), dtype=jnp.bfloat16)
    yb = identity_embedding(xb)
    jax.block_until_ready(yb)
    assert yb.shape == xb.shape and yb.dtype == xb.dtype
    assert bool(jnp.array_equal(yb, xb))

    # Unaligned case: exercises the padded lane-dense fallback.
    xu = jax.random.normal(k2, (2, 3, 5), dtype=jnp.float32)
    yu = identity_embedding(xu)
    jax.block_until_ready(yu)
    assert yu.shape == xu.shape and yu.dtype == xu.dtype
    assert bool(jnp.array_equal(yu, xu))

    print("KERNEL_OK")
</pallas_src>

<mosaic_0001>
module attributes {stable_mosaic.version = 11 : i64} {
  func.func @_copy_kernel(%arg0: i32, %arg1: memref<4x128xf32, #tpu.memory_space<vmem>>, %arg2: memref<4x128xf32, #tpu.memory_space<vmem>>) attributes {dimension_semantics = [#tpu.dimension_semantics<parallel>], iteration_bounds = array<i64: 1>, scalar_prefetch = 0 : i64, scratch_operands = 0 : i64, tpu.core_type = #tpu.core_type<tc>, window_params = [{transform_indices = @transform_0, window_bounds = array<i64: 4, 128>}, {transform_indices = @transform_1, window_bounds = array<i64: 4, 128>}]} {
    %c0 = arith.constant 0 : index
    %c0_0 = arith.constant 0 : index
    %0 = vector.load %arg1[%c0, %c0_0] : memref<4x128xf32, #tpu.memory_space<vmem>>, vector<4x128xf32>
    %c0_1 = arith.constant 0 : index
    %c0_2 = arith.constant 0 : index
    %1 = vector.load %arg2[%c0_1, %c0_2] : memref<4x128xf32, #tpu.memory_space<vmem>>, vector<4x128xf32>
    tpu.vector_store %arg2[%c0_1, %c0_2], %0 {strides = array<i32>} : memref<4x128xf32, #tpu.memory_space<vmem>>, vector<4x128xf32>,
    return
  }
  func.func @transform_0(%arg0: i32) -> (i32, i32) {
    %c0_i32 = arith.constant 0 : i32
    %c0_i32_0 = arith.constant 0 : i32
    return %arg0, %c0_i32 : i32, i32
  }
  func.func @transform_1(%arg0: i32) -> (i32, i32) {
    %c0_i32 = arith.constant 0 : i32
    %c0_i32_0 = arith.constant 0 : i32
    return %arg0, %c0_i32 : i32, i32
  }
}

</mosaic_0001>

<llo_original>
// kernel: tpu_custom_call.1
$region0: #{tpu_custom_call.1}
  #allocation0 [shape = 'u32[]', space=smem, size = 0x4, offset = 0x4, fixed_abs, tag = 'smem constant byte address 0x4 - core index']
  #allocation1 [shape = 'u32[72,128]{1,0:T(1,128)}', space=vmem, size = 0x9000, scoped, tag = 'internal scratch']
  %s0 = inlined_call_operand.hbm [shape: f32[4,128], index: 0, kind: input, shape index: {}]
  %s1 = inlined_call_operand.hbm [shape: f32[4,128], index: 1, kind: output, shape index: {}]
  %s2 = sld [smem:[#allocation0]]
  $region18: #{tpu_custom_call.1} parent=0
    _
  %s4 = ssub.s32 1, %s2
  %s5 = scalar_select 0, %s4, %s2
  $region1: #{tpu_custom_call.1} parent=0
    #allocation2 [shape = 'u8[2048]{0}', space=vmem, size = 0x800, scoped, tag = 'input window, operand 0, single buffered']
    #allocation3 [shape = 's32[1]{0}', space=sflag, size = 0x4, scoped, tag = 'scoped memory for tpu_custom_call.1']
    #allocation4 [shape = 's32[1]{0}', space=sflag, size = 0x4, scoped, tag = 'scoped memory for tpu_custom_call.1']
    #allocation5 [shape = 'u8[2048]{0}', space=vmem, size = 0x800, scoped, tag = 'output window, operand 0, single buffered']
    %6 = vsyncpa [#allocation3], 0
    %7 = vsyncpa [#allocation4], 0
    // Predicated region
    $region2: #{tpu_custom_call.1} parent=1 // pred_check
      _
    $region3: #{tpu_custom_call.1} parent=1 // pred_check_branch
      %9 = sbr.rel (0) target = $region5
    $region4: #{tpu_custom_call.1} parent=1 // pred_region
      %11 = vsyncadd [#allocation3], 0
      %s13 = sshll.u32 %s0, 4
      %s14 = int_to_ptr.hbm [resolvable:$true] %s13
      %s15 = sshll.u32 [#allocation2], 4
      %s16 = int_to_ptr.vmem [resolvable:$true] %s15
      %18 = dma.hbm_to_vmem [thread:$0]  %s14, 64, %s16, [#allocation3]
    $region5: #{tpu_custom_call.1} parent=1 // pred_fallthru
      _
    // Predicated region
    $region6: #{tpu_custom_call.1} parent=1 // pred_check
      _
    $region7: #{tpu_custom_call.1} parent=1 // pred_check_branch
      %20 = sbr.rel (0) target = $region9
    $region8: #{tpu_custom_call.1} parent=1 // pred_region
      %22 = dma.done [#allocation3], 64
    $region9: #{tpu_custom_call.1} parent=1 // pred_fallthru
      _
    %v23 = vld [vmem:[#allocation2] sm:$0xf]
    %24 = vst [vmem:[#allocation5] sm:$0xf] %v23
    // Predicated region
    $region10: #{tpu_custom_call.1} parent=1 // pred_check
      _
    $region11: #{tpu_custom_call.1} parent=1 // pred_check_branch
      %26 = sbr.rel (0) target = $region13
    $region12: #{tpu_custom_call.1} parent=1 // pred_region
      %28 = vsyncadd [#allocation4], 0
      %s30 = sshll.u32 [#allocation5], 4
      %s31 = int_to_ptr.vmem [resolvable:$true] %s30
      %s32 = sshll.u32 %s1, 4
      %s33 = int_to_ptr.hbm [resolvable:$true] %s32
      %35 = dma.vmem_to_hbm [thread:$0]  %s31, 64, %s33, [#allocation4]
    $region13: #{tpu_custom_call.1} parent=1 // pred_fallthru
      _
    // Predicated region
    $region14: #{tpu_custom_call.1} parent=1 // pred_check
      _
    $region15: #{tpu_custom_call.1} parent=1 // pred_check_branch
      %37 = sbr.rel (0) target = $region17
    $region16: #{tpu_custom_call.1} parent=1 // pred_region
      %39 = dma.done [#allocation4], 64
    $region17: #{tpu_custom_call.1} parent=1 // pred_fallthru
      _
    %40 = vsyncpa [#allocation3], 1
    %41 = vsyncpa [#allocation4], 1

</llo_original>
